<compile_context>
chip_gen: v7x
topology: tpu7x:2x2x1
jax: 0.10.0
libtpu: 0.0.40
codegen_flags: <defaults>
</compile_context>

<pallas_src>
import functools
import math

import jax
import jax.numpy as jnp
from jax.experimental import pallas as pl
from jax.experimental.pallas import tpu as pltpu

LRELU_ALPHA = 0.2
LRELU_GAIN = math.sqrt(2.0)
LANE = 128
SUBLANE = 8


def _round_up(x, m):
    return ((x + m - 1) // m) * m


def mapping_kernel(z_ref, w_ref, out_ref, *, num_layers, z_dim, p_dim):
    """Transposed layout: activations are [features, batch_tile] (features on sublanes,
    batch on lanes).  One grid step pushes one batch tile through all layers."""
    tb = z_ref.shape[1]

    # normalize_2nd_moment over the true feature dim (axis 0 == sublanes here).
    zt = z_ref[...].astype(jnp.float32)                        # [z_dim, TB]
    ssq = jnp.sum(zt * zt, axis=0, keepdims=True)              # [1, TB]
    zt = zt * jax.lax.rsqrt(ssq * jnp.float32(1.0 / z_dim) + jnp.float32(1e-8))

    # Pad features to p_dim rows in-register: zero rows plus a bias-carrier row (1.0)
    # in the last reserved row.  Padded weight rows/cols are zero, so the zero rows
    # stay zero through every layer (lrelu(0) == 0) and the carrier stays ~1.0 (the
    # bf16 operand cast rounds it back to exactly 1.0 each layer).
    tail = p_dim - z_dim
    carrier = jnp.where(
        jax.lax.broadcasted_iota(jnp.int32, (tail, tb), 0) == tail - 1,
        jnp.float32(1.0), jnp.float32(0.0))
    x = jnp.concatenate([zt, carrier], axis=0)                 # [P, TB] f32

    pos_gain = jnp.float32(LRELU_GAIN)
    neg_gain = jnp.float32(LRELU_ALPHA * LRELU_GAIN)

    for layer in range(num_layers):                            # statically unrolled
        # y^T = W_eff @ x^T.  Gains + bias are pre-folded into W_eff (bias rides the
        # carrier column, so the MXU does the bias add for free).  bf16 operands feed
        # the MXU; f32 accumulate; elementwise stays f32 (v5e-friendly).
        y = jnp.dot(w_ref[layer], x.astype(jnp.bfloat16),
                    preferred_element_type=jnp.float32)        # [P, TB] f32
        # fused leaky-relu * sqrt(2)
        x = jnp.where(y >= 0, y * pos_gain, y * neg_gain)

    out_ref[...] = x.astype(out_ref.dtype)


def prepare_params(weight_list, bias_list, lr_multiplier, padded_dim):
    """PyTorch-layout weights [out, in] -> pre-scaled, zero-padded bf16 [L, P, P] used
    as y^T = W @ x^T.  The bias is folded into the reserved carrier column (P-1) and
    the carrier row gets a 1/sqrt(2) self-weight so it survives lrelu*sqrt(2) as 1.0."""
    num_layers = len(weight_list)
    P = padded_dim
    w_packed = jnp.zeros((num_layers, P, P), jnp.float32)
    for l, (w, b) in enumerate(zip(weight_list, bias_list)):
        out_f, in_f = w.shape
        w_eff = w.astype(jnp.float32) * (lr_multiplier / math.sqrt(in_f))   # [out, in]
        b_eff = b.astype(jnp.float32) * lr_multiplier
        w_packed = w_packed.at[l, :out_f, :in_f].set(w_eff)
        w_packed = w_packed.at[l, :out_f, P - 1].set(b_eff)     # bias via carrier lane
        w_packed = w_packed.at[l, P - 1, P - 1].set(1.0 / LRELU_GAIN)
    return w_packed.astype(jnp.bfloat16)


def mapping_network_pose(z, weight_list, bias_list, *, num_ws, lr_multiplier,
                         batch_tile=512, out_dtype=jnp.float32):
    """z: [B, z_dim]; weight_list[l]: [out, in] (PyTorch layout); bias_list[l]: [out].
    Returns ws: [B, num_ws, w_dim]."""
    B, z_dim = z.shape
    num_layers = len(weight_list)
    w_dim = weight_list[-1].shape[0]
    feat_max = max([z_dim] + [w.shape[0] for w in weight_list])
    # Feature dims live on sublanes (8-wide); +1 reserves the bias-carrier row.
    P = _round_up(feat_max + 1, SUBLANE)

    w_packed = prepare_params(weight_list, bias_list, lr_multiplier, P)

    # Batch is the lane dimension: tiles are multiples of 128.  Prefer >= 2 grid steps
    # when the batch allows it (v7x has 2 TensorCores; "parallel" shards the grid
    # across them), capped at a vreg-safe tile (~512 keeps x/y well under 64 vregs).
    B_pad_min = _round_up(B, LANE)
    tb_cap = max(LANE, _round_up(batch_tile, LANE))
    if B_pad_min >= 2 * LANE:
        TB = min(tb_cap, _round_up(pl.cdiv(B_pad_min, 2), LANE))
    else:
        TB = B_pad_min
    B_pad = _round_up(B_pad_min, TB)

    # Transposed (feature-major) input [z_dim, B_pad]: only the batch dim is padded in
    # HBM; feature padding / carrier row are built in-register inside the kernel.
    z_t = jnp.zeros((z_dim, B_pad), jnp.float32).at[:, :B].set(z.astype(jnp.float32).T)

    kernel = functools.partial(mapping_kernel, num_layers=num_layers,
                               z_dim=z_dim, p_dim=P)

    cost = pl.CostEstimate(
        flops=2 * B_pad * num_layers * P * P,
        transcendentals=B_pad,
        bytes_accessed=(z_t.size * 4 + w_packed.size * 2 + B_pad * P * 4),
    )

    out_t = pl.pallas_call(
        kernel,
        out_shape=jax.ShapeDtypeStruct((P, B_pad), out_dtype),
        grid_spec=pltpu.PrefetchScalarGridSpec(
            num_scalar_prefetch=0,
            grid=(B_pad // TB,),
            in_specs=[
                pl.BlockSpec((z_dim, TB), lambda i: (0, i)),              # z batch tile
                # Resident weights (constant index_map -> fetched once).  At P=40 the
                # weights are ~25 KB, so default double-buffering is harmless; single
                # buffering only matters once w_dim approaches ~1024.
                pl.BlockSpec((num_layers, P, P), lambda i: (0, 0, 0)),
            ],
            out_specs=pl.BlockSpec((P, TB), lambda i: (0, i)),            # lane-dense out
        ),
        compiler_params=pltpu.CompilerParams(
            dimension_semantics=("parallel",),
        ),
        cost_estimate=cost,
    )(z_t, w_packed)

    # Slice back to the logical (batch, w_dim) and broadcast over num_ws outside the
    # kernel (layout plumbing, not compute).
    x = out_t[:w_dim, :B].T
    return jnp.broadcast_to(x[:, None, :], (B, num_ws, w_dim))


# ---------------------------------------------------------------------------
# References for validation
# ---------------------------------------------------------------------------
def reference_forward_f32(z, weight_list, bias_list, *, num_ws, lr_multiplier):
    """Faithful f32 PyTorch-semantics reference."""
    x = z.astype(jnp.float32)
    x = x * jax.lax.rsqrt(jnp.mean(jnp.square(x), axis=1, keepdims=True) + 1e-8)
    for w, b in zip(weight_list, bias_list):
        out_f, in_f = w.shape
        w_eff = w.astype(jnp.float32) * (lr_multiplier / math.sqrt(in_f))
        b_eff = b.astype(jnp.float32) * lr_multiplier
        y = x @ w_eff.T + b_eff
        x = jnp.where(y >= 0, y, y * LRELU_ALPHA) * LRELU_GAIN
    return jnp.broadcast_to(x[:, None, :], (z.shape[0], num_ws, x.shape[-1]))


def reference_forward_bf16(z, w_packed, *, num_ws, z_dim, w_dim, num_layers):
    """Mirrors the kernel's numerics exactly (transposed layout, carrier-lane bias,
    bf16 matmul operands, f32 accumulate / elementwise)."""
    B = z.shape[0]
    P = w_packed.shape[-1]
    zt = z.astype(jnp.float32).T                                 # [z_dim, B]
    ssq = jnp.sum(zt * zt, axis=0, keepdims=True)
    zt = zt * jax.lax.rsqrt(ssq * (1.0 / z_dim) + 1e-8)
    x = jnp.zeros((P, B), jnp.float32).at[:z_dim, :].set(zt).at[P - 1, :].set(1.0)
    for l in range(num_layers):
        y = jnp.dot(w_packed[l], x.astype(jnp.bfloat16),
                    preferred_element_type=jnp.float32)
        x = jnp.where(y >= 0, y * LRELU_GAIN, y * (LRELU_ALPHA * LRELU_GAIN))
    out = x[:w_dim, :].T
    return jnp.broadcast_to(out[:, None, :], (B, num_ws, w_dim))


def _run_case(key, *, batch, z_dim, w_dim, num_ws, num_layers, lr_multiplier):
    # features_list = [z_dim] + [w_dim]*(num_layers-1) + [w_dim] (embed_features forced to 0)
    features_list = [z_dim] + [w_dim] * (num_layers - 1) + [w_dim]
    kz, kb, *kws = jax.random.split(key, 2 + num_layers)
    z = jax.random.normal(kz, (batch, z_dim), dtype=jnp.float32)

    weight_list, bias_list = [], []
    bkeys = jax.random.split(kb, num_layers)
    for idx in range(num_layers):
        in_f = features_list[idx]
        out_f = features_list[idx + 1]
        # FullyConnectedLayer.__init__: weight = randn([out, in]) / lr_multiplier.
        w = jax.random.normal(kws[idx], (out_f, in_f), dtype=jnp.float32) / lr_multiplier
        # Module init has zero bias; use non-zero ("trained") biases so the
        # carrier-lane bias path is actually exercised.
        b = jax.random.normal(bkeys[idx], (out_f,), dtype=jnp.float32)
        weight_list.append(w)
        bias_list.append(b)

    ws = mapping_network_pose(z, weight_list, bias_list,
                              num_ws=num_ws, lr_multiplier=lr_multiplier)
    ws = jax.block_until_ready(ws)
    assert ws.shape == (batch, num_ws, w_dim)

    # Tight check vs a reference mirroring the kernel's bf16/f32 numerics exactly.
    P = _round_up(max(features_list) + 1, SUBLANE)
    w_packed = prepare_params(weight_list, bias_list, lr_multiplier, P)
    ref_bf16 = reference_forward_bf16(z, w_packed, num_ws=num_ws, z_dim=z_dim,
                                      w_dim=w_dim, num_layers=num_layers)
    assert jnp.allclose(ws, ref_bf16, atol=1e-4, rtol=1e-4), "bf16-mirror mismatch"

    # Looser check vs the faithful f32 PyTorch-semantics reference (difference is
    # purely bf16 matmul-operand rounding accumulated over num_layers).
    ref_f32 = reference_forward_f32(z, weight_list, bias_list,
                                    num_ws=num_ws, lr_multiplier=lr_multiplier)
    assert jnp.allclose(ws, ref_f32, atol=1e-1, rtol=5e-2), "f32 reference mismatch"


if __name__ == "__main__":
    key = jax.random.PRNGKey(0)
    k1, k2 = jax.random.split(key)
    # Small, MappingNetworkPose-consistent shapes (single grid step).
    _run_case(k1, batch=2, z_dim=32, w_dim=32, num_ws=8, num_layers=8,
              lr_multiplier=0.01)
    # Non-aligned batch exercising batch padding and a 2-step "parallel" grid.
    _run_case(k2, batch=300, z_dim=32, w_dim=32, num_ws=8, num_layers=8,
              lr_multiplier=0.01)
    print("KERNEL_OK")
</pallas_src>

<mosaic_0001>
module attributes {stable_mosaic.version = 11 : i64} {
  func.func @mapping_kernel(%arg0: i32, %arg1: memref<32x128xf32, #tpu.memory_space<vmem>>, %arg2: memref<8x40x40xbf16, #tpu.memory_space<vmem>>, %arg3: memref<40x128xf32, #tpu.memory_space<vmem>>) attributes {dimension_semantics = [#tpu.dimension_semantics<parallel>], iteration_bounds = array<i64: 1>, scalar_prefetch = 0 : i64, scratch_operands = 0 : i64, tpu.core_type = #tpu.core_type<tc>, window_params = [{transform_indices = @transform_0, window_bounds = array<i64: 32, 128>}, {pipeline_mode = #tpu.pipeline_mode<synchronous>, transform_indices = @transform_1, window_bounds = array<i64: 8, 40, 40>}, {transform_indices = @transform_2, window_bounds = array<i64: 40, 128>}]} {
    %c0 = arith.constant 0 : index
    %c0_0 = arith.constant 0 : index
    %0 = vector.load %arg1[%c0, %c0_0] : memref<32x128xf32, #tpu.memory_space<vmem>>, vector<32x128xf32>
    %1 = arith.mulf %0, %0 : vector<32x128xf32>
    %cst = arith.constant dense<0.000000e+00> : vector<128xf32>
    %2 = vector.multi_reduction <add>, %1, %cst [0] : vector<32x128xf32> to vector<128xf32>
    %3 = vector.shape_cast %2 : vector<128xf32> to vector<1x128xf32>
    %cst_1 = arith.constant 3.125000e-02 : f32
    %4 = vector.broadcast %cst_1 : f32 to vector<1x128xf32>
    %5 = arith.mulf %3, %4 : vector<1x128xf32>
    %cst_2 = arith.constant 9.99999993E-9 : f32
    %6 = vector.broadcast %cst_2 : f32 to vector<1x128xf32>
    %7 = arith.addf %5, %6 : vector<1x128xf32>
    %8 = math.rsqrt %7 : vector<1x128xf32>
    %9 = vector.broadcast %8 : vector<1x128xf32> to vector<32x128xf32>
    %10 = arith.mulf %0, %9 : vector<32x128xf32>
    %11 = tpu.iota {dimensions = array<i32: 0>} : vector<8x128xi32>
    %c7_i32 = arith.constant 7 : i32
    %12 = vector.broadcast %c7_i32 : i32 to vector<8x128xi32>
    %13 = arith.cmpi eq, %11, %12 : vector<8x128xi32>
    %cst_3 = arith.constant 1.000000e+00 : f32
    %cst_4 = arith.constant 0.000000e+00 : f32
    %14 = vector.broadcast %cst_3 : f32 to vector<8x128xf32>
    %15 = vector.broadcast %cst_4 : f32 to vector<8x128xf32>
    %16 = arith.select %13, %14, %15 : vector<8x128xi1>, vector<8x128xf32>
    %17 = tpu.concatenate %10, %16 in 0 : vector<32x128xf32>, vector<8x128xf32> -> vector<40x128xf32>
    %c0_5 = arith.constant 0 : index
    %c0_6 = arith.constant 0 : index
    %c0_7 = arith.constant 0 : index
    %18 = vector.load %arg2[%c0_5, %c0_6, %c0_7] : memref<8x40x40xbf16, #tpu.memory_space<vmem>>, vector<1x40x40xbf16>
    %19 = vector.shape_cast %18 : vector<1x40x40xbf16> to vector<40x40xbf16>
    %20 = arith.truncf %17 : vector<40x128xf32> to vector<40x128xbf16>
    %cst_8 = arith.constant dense<0.000000e+00> : vector<40x128xf32>
    %21 = tpu.matmul %19, %20, %cst_8 {dimension_numbers = #tpu.dot_dimension_numbers<[1], [0], [0], [1], [0, 0, 1, 1], [], []>} : vector<40x40xbf16>, vector<40x128xbf16>, vector<40x128xf32> -> vector<40x128xf32>
    %cst_9 = arith.constant 0.000000e+00 : f32
    %22 = vector.broadcast %cst_9 : f32 to vector<40x128xf32>
    %23 = arith.cmpf oge, %21, %22 : vector<40x128xf32>
    %cst_10 = arith.constant 1.41421354 : f32
    %24 = vector.broadcast %cst_10 : f32 to vector<40x128xf32>
    %25 = arith.mulf %21, %24 : vector<40x128xf32>
    %cst_11 = arith.constant 0.282842726 : f32
    %26 = vector.broadcast %cst_11 : f32 to vector<40x128xf32>
    %27 = arith.mulf %21, %26 : vector<40x128xf32>
    %28 = arith.select %23, %25, %27 : vector<40x128xi1>, vector<40x128xf32>
    %c1 = arith.constant 1 : index
    %c0_12 = arith.constant 0 : index
    %c0_13 = arith.constant 0 : index
    %29 = vector.load %arg2[%c1, %c0_12, %c0_13] : memref<8x40x40xbf16, #tpu.memory_space<vmem>>, vector<1x40x40xbf16>
    %30 = vector.shape_cast %29 : vector<1x40x40xbf16> to vector<40x40xbf16>
    %31 = arith.truncf %28 : vector<40x128xf32> to vector<40x128xbf16>
    %cst_14 = arith.constant dense<0.000000e+00> : vector<40x128xf32>
    %32 = tpu.matmul %30, %31, %cst_14 {dimension_numbers = #tpu.dot_dimension_numbers<[1], [0], [0], [1], [0, 0, 1, 1], [], []>} : vector<40x40xbf16>, vector<40x128xbf16>, vector<40x128xf32> -> vector<40x128xf32>
    %cst_15 = arith.constant 0.000000e+00 : f32
    %33 = vector.broadcast %cst_15 : f32 to vector<40x128xf32>
    %34 = arith.cmpf oge, %32, %33 : vector<40x128xf32>
    %cst_16 = arith.constant 1.41421354 : f32
    %35 = vector.broadcast %cst_16 : f32 to vector<40x128xf32>
    %36 = arith.mulf %32, %35 : vector<40x128xf32>
    %cst_17 = arith.constant 0.282842726 : f32
    %37 = vector.broadcast %cst_17 : f32 to vector<40x128xf32>
    %38 = arith.mulf %32, %37 : vector<40x128xf32>
    %39 = arith.select %34, %36, %38 : vector<40x128xi1>, vector<40x128xf32>
    %c2 = arith.constant 2 : index
    %c0_18 = arith.constant 0 : index
    %c0_19 = arith.constant 0 : index
    %40 = vector.load %arg2[%c2, %c0_18, %c0_19] : memref<8x40x40xbf16, #tpu.memory_space<vmem>>, vector<1x40x40xbf16>
    %41 = vector.shape_cast %40 : vector<1x40x40xbf16> to vector<40x40xbf16>
    %42 = arith.truncf %39 : vector<40x128xf32> to vector<40x128xbf16>
    %cst_20 = arith.constant dense<0.000000e+00> : vector<40x128xf32>
    %43 = tpu.matmul %41, %42, %cst_20 {dimension_numbers = #tpu.dot_dimension_numbers<[1], [0], [0], [1], [0, 0, 1, 1], [], []>} : vector<40x40xbf16>, vector<40x128xbf16>, vector<40x128xf32> -> vector<40x128xf32>
    %cst_21 = arith.constant 0.000000e+00 : f32
    %44 = vector.broadcast %cst_21 : f32 to vector<40x128xf32>
    %45 = arith.cmpf oge, %43, %44 : vector<40x128xf32>
    %cst_22 = arith.constant 1.41421354 : f32
    %46 = vector.broadcast %cst_22 : f32 to vector<40x128xf32>
    %47 = arith.mulf %43, %46 : vector<40x128xf32>
    %cst_23 = arith.constant 0.282842726 : f32
    %48 = vector.broadcast %cst_23 : f32 to vector<40x128xf32>
    %49 = arith.mulf %43, %48 : vector<40x128xf32>
    %50 = arith.select %45, %47, %49 : vector<40x128xi1>, vector<40x128xf32>
    %c3 = arith.constant 3 : index
    %c0_24 = arith.constant 0 : index
    %c0_25 = arith.constant 0 : index
    %51 = vector.load %arg2[%c3, %c0_24, %c0_25] : memref<8x40x40xbf16, #tpu.memory_space<vmem>>, vector<1x40x40xbf16>
    %52 = vector.shape_cast %51 : vector<1x40x40xbf16> to vector<40x40xbf16>
    %53 = arith.truncf %50 : vector<40x128xf32> to vector<40x128xbf16>
    %cst_26 = arith.constant dense<0.000000e+00> : vector<40x128xf32>
    %54 = tpu.matmul %52, %53, %cst_26 {dimension_numbers = #tpu.dot_dimension_numbers<[1], [0], [0], [1], [0, 0, 1, 1], [], []>} : vector<40x40xbf16>, vector<40x128xbf16>, vector<40x128xf32> -> vector<40x128xf32>
    %cst_27 = arith.constant 0.000000e+00 : f32
    %55 = vector.broadcast %cst_27 : f32 to vector<40x128xf32>
    %56 = arith.cmpf oge, %54, %55 : vector<40x128xf32>
    %cst_28 = arith.constant 1.41421354 : f32
    %57 = vector.broadcast %cst_28 : f32 to vector<40x128xf32>
    %58 = arith.mulf %54, %57 : vector<40x128xf32>
    %cst_29 = arith.constant 0.282842726 : f32
    %59 = vector.broadcast %cst_29 : f32 to vector<40x128xf32>
    %60 = arith.mulf %54, %59 : vector<40x128xf32>
    %61 = arith.select %56, %58, %60 : vector<40x128xi1>, vector<40x128xf32>
    %c4 = arith.constant 4 : index
    %c0_30 = arith.constant 0 : index
    %c0_31 = arith.constant 0 : index
    %62 = vector.load %arg2[%c4, %c0_30, %c0_31] : memref<8x40x40xbf16, #tpu.memory_space<vmem>>, vector<1x40x40xbf16>
    %63 = vector.shape_cast %62 : vector<1x40x40xbf16> to vector<40x40xbf16>
    %64 = arith.truncf %61 : vector<40x128xf32> to vector<40x128xbf16>
    %cst_32 = arith.constant dense<0.000000e+00> : vector<40x128xf32>
    %65 = tpu.matmul %63, %64, %cst_32 {dimension_numbers = #tpu.dot_dimension_numbers<[1], [0], [0], [1], [0, 0, 1, 1], [], []>} : vector<40x40xbf16>, vector<40x128xbf16>, vector<40x128xf32> -> vector<40x128xf32>
    %cst_33 = arith.constant 0.000000e+00 : f32
    %66 = vector.broadcast %cst_33 : f32 to vector<40x128xf32>
    %67 = arith.cmpf oge, %65, %66 : vector<40x128xf32>
    %cst_34 = arith.constant 1.41421354 : f32
    %68 = vector.broadcast %cst_34 : f32 to vector<40x128xf32>
    %69 = arith.mulf %65, %68 : vector<40x128xf32>
    %cst_35 = arith.constant 0.282842726 : f32
    %70 = vector.broadcast %cst_35 : f32 to vector<40x128xf32>
    %71 = arith.mulf %65, %70 : vector<40x128xf32>
    %72 = arith.select %67, %69, %71 : vector<40x128xi1>, vector<40x128xf32>
    %c5 = arith.constant 5 : index
    %c0_36 = arith.constant 0 : index
    %c0_37 = arith.constant 0 : index
    %73 = vector.load %arg2[%c5, %c0_36, %c0_37] : memref<8x40x40xbf16, #tpu.memory_space<vmem>>, vector<1x40x40xbf16>
    %74 = vector.shape_cast %73 : vector<1x40x40xbf16> to vector<40x40xbf16>
    %75 = arith.truncf %72 : vector<40x128xf32> to vector<40x128xbf16>
    %cst_38 = arith.constant dense<0.000000e+00> : vector<40x128xf32>
    %76 = tpu.matmul %74, %75, %cst_38 {dimension_numbers = #tpu.dot_dimension_numbers<[1], [0], [0], [1], [0, 0, 1, 1], [], []>} : vector<40x40xbf16>, vector<40x128xbf16>, vector<40x128xf32> -> vector<40x128xf32>
    %cst_39 = arith.constant 0.000000e+00 : f32
    %77 = vector.broadcast %cst_39 : f32 to vector<40x128xf32>
    %78 = arith.cmpf oge, %76, %77 : vector<40x128xf32>
    %cst_40 = arith.constant 1.41421354 : f32
    %79 = vector.broadcast %cst_40 : f32 to vector<40x128xf32>
    %80 = arith.mulf %76, %79 : vector<40x128xf32>
    %cst_41 = arith.constant 0.282842726 : f32
    %81 = vector.broadcast %cst_41 : f32 to vector<40x128xf32>
    %82 = arith.mulf %76, %81 : vector<40x128xf32>
    %83 = arith.select %78, %80, %82 : vector<40x128xi1>, vector<40x128xf32>
    %c6 = arith.constant 6 : index
    %c0_42 = arith.constant 0 : index
    %c0_43 = arith.constant 0 : index
    %84 = vector.load %arg2[%c6, %c0_42, %c0_43] : memref<8x40x40xbf16, #tpu.memory_space<vmem>>, vector<1x40x40xbf16>
    %85 = vector.shape_cast %84 : vector<1x40x40xbf16> to vector<40x40xbf16>
    %86 = arith.truncf %83 : vector<40x128xf32> to vector<40x128xbf16>
    %cst_44 = arith.constant dense<0.000000e+00> : vector<40x128xf32>
    %87 = tpu.matmul %85, %86, %cst_44 {dimension_numbers = #tpu.dot_dimension_numbers<[1], [0], [0], [1], [0, 0, 1, 1], [], []>} : vector<40x40xbf16>, vector<40x128xbf16>, vector<40x128xf32> -> vector<40x128xf32>
    %cst_45 = arith.constant 0.000000e+00 : f32
    %88 = vector.broadcast %cst_45 : f32 to vector<40x128xf32>
    %89 = arith.cmpf oge, %87, %88 : vector<40x128xf32>
    %cst_46 = arith.constant 1.41421354 : f32
    %90 = vector.broadcast %cst_46 : f32 to vector<40x128xf32>
    %91 = arith.mulf %87, %90 : vector<40x128xf32>
    %cst_47 = arith.constant 0.282842726 : f32
    %92 = vector.broadcast %cst_47 : f32 to vector<40x128xf32>
    %93 = arith.mulf %87, %92 : vector<40x128xf32>
    %94 = arith.select %89, %91, %93 : vector<40x128xi1>, vector<40x128xf32>
    %c7 = arith.constant 7 : index
    %c0_48 = arith.constant 0 : index
    %c0_49 = arith.constant 0 : index
    %95 = vector.load %arg2[%c7, %c0_48, %c0_49] : memref<8x40x40xbf16, #tpu.memory_space<vmem>>, vector<1x40x40xbf16>
    %96 = vector.shape_cast %95 : vector<1x40x40xbf16> to vector<40x40xbf16>
    %97 = arith.truncf %94 : vector<40x128xf32> to vector<40x128xbf16>
    %cst_50 = arith.constant dense<0.000000e+00> : vector<40x128xf32>
    %98 = tpu.matmul %96, %97, %cst_50 {dimension_numbers = #tpu.dot_dimension_numbers<[1], [0], [0], [1], [0, 0, 1, 1], [], []>} : vector<40x40xbf16>, vector<40x128xbf16>, vector<40x128xf32> -> vector<40x128xf32>
    %cst_51 = arith.constant 0.000000e+00 : f32
    %99 = vector.broadcast %cst_51 : f32 to vector<40x128xf32>
    %100 = arith.cmpf oge, %98, %99 : vector<40x128xf32>
    %cst_52 = arith.constant 1.41421354 : f32
    %101 = vector.broadcast %cst_52 : f32 to vector<40x128xf32>
    %102 = arith.mulf %98, %101 : vector<40x128xf32>
    %cst_53 = arith.constant 0.282842726 : f32
    %103 = vector.broadcast %cst_53 : f32 to vector<40x128xf32>
    %104 = arith.mulf %98, %103 : vector<40x128xf32>
    %105 = arith.select %100, %102, %104 : vector<40x128xi1>, vector<40x128xf32>
    %c0_54 = arith.constant 0 : index
    %c0_55 = arith.constant 0 : index
    %106 = vector.load %arg3[%c0_54, %c0_55] : memref<40x128xf32, #tpu.memory_space<vmem>>, vector<40x128xf32>
    tpu.vector_store %arg3[%c0_54, %c0_55], %105 {strides = array<i32>} : memref<40x128xf32, #tpu.memory_space<vmem>>, vector<40x128xf32>,
    return
  }
  func.func @transform_0(%arg0: i32) -> (i32, i32) {
    %c0_i32 = arith.constant 0 : i32
    %c0_i32_0 = arith.constant 0 : i32
    return %c0_i32, %arg0 : i32, i32
  }
  func.func @transform_1(%arg0: i32) -> (i32, i32, i32) {
    %c0_i32 = arith.constant 0 : i32
    %c0_i32_0 = arith.constant 0 : i32
    %c0_i32_1 = arith.constant 0 : i32
    %c0_i32_2 = arith.constant 0 : i32
    return %c0_i32, %c0_i32_0, %c0_i32_1 : i32, i32, i32
  }
  func.func @transform_2(%arg0: i32) -> (i32, i32) {
    %c0_i32 = arith.constant 0 : i32
    %c0_i32_0 = arith.constant 0 : i32
    return %c0_i32, %arg0 : i32, i32
  }
}

</mosaic_0001>

<llo_original>
// kernel: tpu_custom_call.1
$region0: #{tpu_custom_call.1}
  #allocation0 [shape = 'u32[]', space=smem, size = 0x4, offset = 0x4, fixed_abs, tag = 'smem constant byte address 0x4 - core index']
  #allocation1 [shape = 'u32[144,128]{1,0:T(1,128)}', space=vmem, size = 0x12000, scoped, tag = 'internal scratch']
  %s0 = inlined_call_operand.hbm [shape: f32[32,128], index: 0, kind: input, shape index: {}]
  %s1 = inlined_call_operand.hbm [shape: bf16[8,40,40], index: 1, kind: input, shape index: {}]
  %s2 = inlined_call_operand.hbm [shape: f32[40,128], index: 2, kind: output, shape index: {}]
  %s3 = sld [smem:[#allocation0]]
  $region26: #{tpu_custom_call.1} parent=0
    _
  %s5 = ssub.s32 1, %s3
  %s6 = scalar_select 0, %s5, %s3
  $region1: #{tpu_custom_call.1} parent=0
    #allocation2 [shape = 'u8[16384]{0}', space=vmem, size = 0x4000, scoped, tag = 'input window, operand 0, single buffered']
    #allocation3 [shape = 's32[1]{0}', space=sflag, size = 0x4, scoped, tag = 'scoped memory for tpu_custom_call.1']
    #allocation4 [shape = 's32[1]{0}', space=sflag, size = 0x4, scoped, tag = 'scoped memory for tpu_custom_call.1']
    #allocation5 [shape = 'u8[81920]{0}', space=vmem, size = 0x14000, scoped, tag = 'input window, operand 1, single buffered']
    #allocation6 [shape = 's32[1]{0}', space=sflag, size = 0x4, scoped, tag = 'scoped memory for tpu_custom_call.1']
    #allocation7 [shape = 'u8[20480]{0}', space=vmem, size = 0x5000, scoped, tag = 'output window, operand 0, single buffered']
    %7 = vsyncpa [#allocation3], 0
    %8 = vsyncpa [#allocation6], 0
    %9 = vsyncpa [#allocation4], 0
    // Predicated region
    $region2: #{tpu_custom_call.1} parent=1 // pred_check
      _
    $region3: #{tpu_custom_call.1} parent=1 // pred_check_branch
      %11 = sbr.rel (0) target = $region5
    $region4: #{tpu_custom_call.1} parent=1 // pred_region
      %s13 = ssub.s32 512, 512
      %14 = vsyncadd [#allocation3], %s13
      %s15 = sshll.u32 [#allocation2], 4
      %s16 = int_to_ptr.vmem [resolvable:$true] %s15
      %21 = dma.hbm_to_vmem [thread:$0]  %s0, 512, %s16, [#allocation3], 128, 128, 8
    $region5: #{tpu_custom_call.1} parent=1 // pred_fallthru
      _
    // Predicated region
    $region6: #{tpu_custom_call.1} parent=1 // pred_check
      _
    $region7: #{tpu_custom_call.1} parent=1 // pred_check_branch
      %23 = sbr.rel (0) target = $region9
    $region8: #{tpu_custom_call.1} parent=1 // pred_region
      %s25 = ssub.s32 2560, 2560
      %26 = vsyncadd [#allocation6], %s25
      %s27 = sshll.u32 [#allocation5], 4
      %s28 = int_to_ptr.vmem [resolvable:$true] %s27
      %33 = dma.hbm_to_vmem [thread:$0]  %s1, 2560, %s28, [#allocation6], 64, 64, 4
    $region9: #{tpu_custom_call.1} parent=1 // pred_fallthru
      _
    // Predicated region
    $region10: #{tpu_custom_call.1} parent=1 // pred_check
      _
    $region11: #{tpu_custom_call.1} parent=1 // pred_check_branch
      %35 = sbr.rel (0) target = $region13
    $region12: #{tpu_custom_call.1} parent=1 // pred_region
      %36 = dma.done [#allocation3], 512
    $region13: #{tpu_custom_call.1} parent=1 // pred_fallthru
      _
    // Predicated region
    $region14: #{tpu_custom_call.1} parent=1 // pred_check
      _
    $region15: #{tpu_custom_call.1} parent=1 // pred_check_branch
      %38 = sbr.rel (0) target = $region17
    $region16: #{tpu_custom_call.1} parent=1 // pred_region
      %39 = dma.done [#allocation6], 2560
    $region17: #{tpu_custom_call.1} parent=1 // pred_fallthru
      _
    %v41 = vld [vmem:[#allocation2] sm:$0xff]
    %v42 = vld [vmem:[#allocation2 + $0x8] sm:$0xff]
    %v43 = vld [vmem:[#allocation2 + $0x10] sm:$0xff]
    %v44 = vld [vmem:[#allocation2 + $0x18] sm:$0xff]
    %v45 = vmul.f32 %v41, %v41
    %v46 = vmul.f32 %v42, %v42
    %v47 = vmul.f32 %v43, %v43
    %v48 = vmul.f32 %v44, %v44
    %v49 = vadd.f32 %v45, %v46
    %v50 = vadd.f32 %v49, %v47
    %v51 = vadd.f32 %v50, %v48
    %v52 = vrot.slane %v51, 4
    %v53 = vadd.f32 %v51, %v52
    %v54 = vrot.slane %v53, 2
    %v55 = vadd.f32 %v53, %v54
    %v56 = vrot.slane %v55, 1
    %v57 = vadd.f32 %v55, %v56
    %v58 = vmul.f32 %v57, 0.03125
    %v59 = vadd.f32 %v58, 1e-08
    %v60 = vrsqrt.pop %v59
    %v61 = vmul.f32 %v41, %v60
    %v62 = vmul.f32 %v42, %v60
    %v63 = vmul.f32 %v43, %v60
    %v64 = vmul.f32 %v44, %v60
    %v65 = vlaneseq
    %v66 = vshrl.u32 %v65, 7
    %vm67 = vcmp.eq.s32.totalorder %v66, 7
    %v68 = vsel %vm67, 1.0, 0.0
    %v69 = vld [vmem:[#allocation5] sm:$0xf]
    %v70 = vld [vmem:[#allocation5 + $0x4] sm:$0xf]
    %v71 = vld [vmem:[#allocation5 + $0x8] sm:$0xf]
    %v72 = vld [vmem:[#allocation5 + $0xc] sm:$0xf]
    %v73 = vld [vmem:[#allocation5 + $0x10] sm:$0xf]
    %v74 = vpack.c.bf16 %v62, %v61
    %v75 = vpack.c.bf16 %v64, %v63
    %v76 = vpack.c.bf16 %v68, %v68
    %v82 = vunpack.c.l.b16 %v69
    %v83 = vunpack.c.l.b16 %v70
    %v84 = vunpack.c.l.b16 %v71
    %v85 = vunpack.c.l.b16 %v72
    %v86 = vunpack.c.l.b16 %v73
    %v87 = vpack.c.b16 %v83, %v82
    %v88 = vpack.c.b16 %v85, %v84
    %v89 = vpack.c.b16 %v86, %v86
    %vm90 = vcmask 326656
    %v92 = vsel %vm90, %v87, 0
    %v95 = vsel %vm90, %v88, 0
    %v98 = vsel %vm90, %v89, 0
    %vm100 = vcmask 1043456
    %v102 = vsel %vm100, %v76, 0
    %104 = vmatprep.subr.bf16.mxu0 0
    %105 = vmatpush1.bf16.msra.mxu0 %v74
    %106 = vmatprep.subr.bf16.mxu0 0
    %107 = vmatpush1.bf16.msra.mxu0 %v75
    %108 = vmatprep.subr.bf16.mxu0 0
    %109 = vmatpush1.bf16.msra.mxu0 %v102
    %110 = vmatprep.subr.bf16.mxu0 0
    %111 = vmatpush1.bf16.msra.mxu0 0
    %112 = vmatprep.subr.bf16.mxu0 0
    %113 = vmatpush1.bf16.msra.mxu0 0
    %114 = vmatprep.subr.bf16.mxu0 0
    %115 = vmatpush1.bf16.msra.mxu0 0
    %116 = vmatprep.subr.bf16.mxu0 0
    %117 = vmatpush1.bf16.msra.mxu0 0
    %118 = vmatprep.subr.bf16.mxu0 0
    %119 = vmatpush1.bf16.msra.mxu0 0
    %120 = vmatprep.subr.bf16.mxu0 0
    %121 = vmatpush1.bf16.msra.mxu0 0
    %122 = vmatprep.subr.bf16.mxu0 0
    %123 = vmatpush1.bf16.msra.mxu0 0
    %124 = vmatprep.subr.bf16.mxu0 0
    %125 = vmatpush1.bf16.msra.mxu0 0
    %126 = vmatprep.subr.bf16.mxu0 0
    %127 = vmatpush1.bf16.msra.mxu0 0
    %128 = vmatprep.subr.bf16.mxu0 0
    %129 = vmatpush1.bf16.msra.mxu0 0
    %130 = vmatprep.subr.bf16.mxu0 0
    %131 = vmatpush1.bf16.msra.mxu0 0
    %132 = vmatprep.subr.bf16.mxu0 0
    %133 = vmatpush1.bf16.msra.mxu0 0
    %134 = vmatprep.subr.bf16.mxu0 0
    %135 = vmatpush1.bf16.msra.mxu0 0
    %136 = vmatprep.mubr.bf16.mxu0 0
    %137 = vmatmul.mubr.bf16.gmra.mrb[0].mxu0 %v92
    %v138 = vpop.f32.mrb[0].mxu0
    %v139 = vadd.f32 0.0, %v138
    %v140 = vpop.f32.mrb[0].mxu0
    %v141 = vpop.f32.mrb[0].mxu0
    %v142 = vadd.f32 0.0, %v141
    %v143 = vpop.f32.mrb[0].mxu0
    %144 = vmatprep.mubr.bf16.mxu0 0
    %145 = vmatmul.mubr.bf16.gmra.mrb[0].mxu0 %v95
    %v146 = vpop.f32.mrb[0].mxu0
    %v147 = vadd.f32 0.0, %v146
    %v148 = vpop.f32.mrb[0].mxu0
    %v149 = vpop.f32.mrb[0].mxu0
    %v150 = vadd.f32 0.0, %v149
    %v151 = vpop.f32.mrb[0].mxu0
    %152 = vmatprep.mubr.bf16.mxu0 0
    %153 = vmatmul.mubr.bf16.gmra.mrb[0].mxu0 %v98
    %v154 = vpop.f32.mrb[0].mxu0
    %v155 = vadd.f32 0.0, %v154
    %v156 = vpop.f32.mrb[0].mxu0
    %v157 = vpop.f32.mrb[0].mxu0
    %v158 = vpop.f32.mrb[0].mxu0
    %159 = vdwg.mxu0
    %vm160 = vcmp.ge.f32.partialorder %v139, 0.0
    %vm161 = vcmp.ge.f32.partialorder %v142, 0.0
    %vm162 = vcmp.ge.f32.partialorder %v147, 0.0
    %vm163 = vcmp.ge.f32.partialorder %v150, 0.0
    %vm164 = vcmp.ge.f32.partialorder %v155, 0.0
    %v165 = vmul.f32 %v139, 1.4142135
    %v166 = vmul.f32 %v142, 1.4142135
    %v167 = vmul.f32 %v147, 1.4142135
    %v168 = vmul.f32 %v150, 1.4142135
    %v169 = vmul.f32 %v155, 1.4142135
    %v170 = vmul.f32 %v139, 0.28284273
    %v171 = vmul.f32 %v142, 0.28284273
    %v172 = vmul.f32 %v147, 0.28284273
    %v173 = vmul.f32 %v150, 0.28284273
    %v174 = vmul.f32 %v155, 0.28284273
    %v175 = vsel %vm160, %v165, %v170
    %v176 = vsel %vm161, %v166, %v171
    %v177 = vsel %vm162, %v167, %v172
    %v178 = vsel %vm163, %v168, %v173
    %v179 = vsel %vm164, %v169, %v174
    %s180 = scalar_lea.vmem [#allocation5], 20
    %v181 = vld [vmem:[%s180] sm:$0xf]
    %v182 = vld [vmem:[%s180 + $0x4] sm:$0xf]
    %v183 = vld [vmem:[%s180 + $0x8] sm:$0xf]
    %v184 = vld [vmem:[%s180 + $0xc] sm:$0xf]
    %v185 = vld [vmem:[%s180 + $0x10] sm:$0xf]
    %v186 = vpack.c.bf16 %v176, %v175
    %v187 = vpack.c.bf16 %v178, %v177
    %v188 = vpack.c.bf16 %v179, %v179
    %v194 = vunpack.c.l.b16 %v181
    %v195 = vunpack.c.l.b16 %v182
    %v196 = vunpack.c.l.b16 %v183
    %v197 = vunpack.c.l.b16 %v184
    %v198 = vunpack.c.l.b16 %v185
    %v199 = vpack.c.b16 %v195, %v194
    %v200 = vpack.c.b16 %v197, %v196
    %v201 = vpack.c.b16 %v198, %v198
    %v203 = vsel %vm90, %v199, 0
    %v206 = vsel %vm90, %v200, 0
    %v209 = vsel %vm90, %v201, 0
    %v212 = vsel %vm100, %v188, 0
    %214 = vmatprep.subr.bf16.mxu0 0
    %215 = vmatpush1.bf16.msra.mxu0 %v186
    %216 = vmatprep.subr.bf16.mxu0 0
    %217 = vmatpush1.bf16.msra.mxu0 %v187
    %218 = vmatprep.subr.bf16.mxu0 0
    %219 = vmatpush1.bf16.msra.mxu0 %v212
    %220 = vmatprep.subr.bf16.mxu0 0
    %221 = vmatpush1.bf16.msra.mxu0 0
    %222 = vmatprep.subr.bf16.mxu0 0
    %223 = vmatpush1.bf16.msra.mxu0 0
    %224 = vmatprep.subr.bf16.mxu0 0
    %225 = vmatpush1.bf16.msra.mxu0 0
    %226 = vmatprep.subr.bf16.mxu0 0
    %227 = vmatpush1.bf16.msra.mxu0 0
    %228 = vmatprep.subr.bf16.mxu0 0
    %229 = vmatpush1.bf16.msra.mxu0 0
    %230 = vmatprep.subr.bf16.mxu0 0
    %231 = vmatpush1.bf16.msra.mxu0 0
    %232 = vmatprep.subr.bf16.mxu0 0
    %233 = vmatpush1.bf16.msra.mxu0 0
    %234 = vmatprep.subr.bf16.mxu0 0
    %235 = vmatpush1.bf16.msra.mxu0 0
    %236 = vmatprep.subr.bf16.mxu0 0
    %237 = vmatpush1.bf16.msra.mxu0 0
    %238 = vmatprep.subr.bf16.mxu0 0
    %239 = vmatpush1.bf16.msra.mxu0 0
    %240 = vmatprep.subr.bf16.mxu0 0
    %241 = vmatpush1.bf16.msra.mxu0 0
    %242 = vmatprep.subr.bf16.mxu0 0
    %243 = vmatpush1.bf16.msra.mxu0 0
    %244 = vmatprep.subr.bf16.mxu0 0
    %245 = vmatpush1.bf16.msra.mxu0 0
    %246 = vmatprep.mubr.bf16.mxu0 0
    %247 = vmatmul.mubr.bf16.gmra.mrb[0].mxu0 %v203
    %v248 = vpop.f32.mrb[0].mxu0
    %v249 = vadd.f32 0.0, %v248
    %v250 = vpop.f32.mrb[0].mxu0
    %v251 = vpop.f32.mrb[0].mxu0
    %v252 = vadd.f32 0.0, %v251
    %v253 = vpop.f32.mrb[0].mxu0
    %254 = vmatprep.mubr.bf16.mxu0 0
    %255 = vmatmul.mubr.bf16.gmra.mrb[0].mxu0 %v206
    %v256 = vpop.f32.mrb[0].mxu0
    %v257 = vadd.f32 0.0, %v256
    %v258 = vpop.f32.mrb[0].mxu0
    %v259 = vpop.f32.mrb[0].mxu0
    %v260 = vadd.f32 0.0, %v259
    %v261 = vpop.f32.mrb[0].mxu0
    %262 = vmatprep.mubr.bf16.mxu0 0
    %263 = vmatmul.mubr.bf16.gmra.mrb[0].mxu0 %v209
    %v264 = vpop.f32.mrb[0].mxu0
    %v265 = vadd.f32 0.0, %v264
    %v266 = vpop.f32.mrb[0].mxu0
    %v267 = vpop.f32.mrb[0].mxu0
    %v268 = vpop.f32.mrb[0].mxu0
    %269 = vdwg.mxu0
    %vm270 = vcmp.ge.f32.partialorder %v249, 0.0
    %vm271 = vcmp.ge.f32.partialorder %v252, 0.0
    %vm272 = vcmp.ge.f32.partialorder %v257, 0.0
    %vm273 = vcmp.ge.f32.partialorder %v260, 0.0
    %vm274 = vcmp.ge.f32.partialorder %v265, 0.0
    %v275 = vmul.f32 %v249, 1.4142135
    %v276 = vmul.f32 %v252, 1.4142135
    %v277 = vmul.f32 %v257, 1.4142135
    %v278 = vmul.f32 %v260, 1.4142135
    %v279 = vmul.f32 %v265, 1.4142135
    %v280 = vmul.f32 %v249, 0.28284273
    %v281 = vmul.f32 %v252, 0.28284273
    %v282 = vmul.f32 %v257, 0.28284273
    %v283 = vmul.f32 %v260, 0.28284273
    %v284 = vmul.f32 %v265, 0.28284273
    %v285 = vsel %vm270, %v275, %v280
    %v286 = vsel %vm271, %v276, %v281
    %v287 = vsel %vm272, %v277, %v282
    %v288 = vsel %vm273, %v278, %v283
    %v289 = vsel %vm274, %v279, %v284
    %s290 = scalar_lea.vmem [#allocation5], 40
    %v291 = vld [vmem:[%s290] sm:$0xf]
    %v292 = vld [vmem:[%s290 + $0x4] sm:$0xf]
    %v293 = vld [vmem:[%s290 + $0x8] sm:$0xf]
    %v294 = vld [vmem:[%s290 + $0xc] sm:$0xf]
    %v295 = vld [vmem:[%s290 + $0x10] sm:$0xf]
    %v296 = vpack.c.bf16 %v286, %v285
    %v297 = vpack.c.bf16 %v288, %v287
    %v298 = vpack.c.bf16 %v289, %v289
    %v304 = vunpack.c.l.b16 %v291
    %v305 = vunpack.c.l.b16 %v292
    %v306 = vunpack.c.l.b16 %v293
    %v307 = vunpack.c.l.b16 %v294
    %v308 = vunpack.c.l.b16 %v295
    %v309 = vpack.c.b16 %v305, %v304
    %v310 = vpack.c.b16 %v307, %v306
    %v311 = vpack.c.b16 %v308, %v308
    %v313 = vsel %vm90, %v309, 0
    %v316 = vsel %vm90, %v310, 0
    %v319 = vsel %vm90, %v311, 0
    %v322 = vsel %vm100, %v298, 0
    %324 = vmatprep.subr.bf16.mxu0 0
    %325 = vmatpush1.bf16.msra.mxu0 %v296
    %326 = vmatprep.subr.bf16.mxu0 0
    %327 = vmatpush1.bf16.msra.mxu0 %v297
    %328 = vmatprep.subr.bf16.mxu0 0
    %329 = vmatpush1.bf16.msra.mxu0 %v322
    %330 = vmatprep.subr.bf16.mxu0 0
    %331 = vmatpush1.bf16.msra.mxu0 0
    %332 = vmatprep.subr.bf16.mxu0 0
    %333 = vmatpush1.bf16.msra.mxu0 0
    %334 = vmatprep.subr.bf16.mxu0 0
    %335 = vmatpush1.bf16.msra.mxu0 0
    %336 = vmatprep.subr.bf16.mxu0 0
    %337 = vmatpush1.bf16.msra.mxu0 0
    %338 = vmatprep.subr.bf16.mxu0 0
    %339 = vmatpush1.bf16.msra.mxu0 0
    %340 = vmatprep.subr.bf16.mxu0 0
    %341 = vmatpush1.bf16.msra.mxu0 0
    %342 = vmatprep.subr.bf16.mxu0 0
    %343 = vmatpush1.bf16.msra.mxu0 0
    %344 = vmatprep.subr.bf16.mxu0 0
    %345 = vmatpush1.bf16.msra.mxu0 0
    %346 = vmatprep.subr.bf16.mxu0 0
    %347 = vmatpush1.bf16.msra.mxu0 0
    %348 = vmatprep.subr.bf16.mxu0 0
    %349 = vmatpush1.bf16.msra.mxu0 0
    %350 = vmatprep.subr.bf16.mxu0 0
    %351 = vmatpush1.bf16.msra.mxu0 0
    %352 = vmatprep.subr.bf16.mxu0 0
    %353 = vmatpush1.bf16.msra.mxu0 0
    %354 = vmatprep.subr.bf16.mxu0 0
    %355 = vmatpush1.bf16.msra.mxu0 0
    %356 = vmatprep.mubr.bf16.mxu0 0
    %357 = vmatmul.mubr.bf16.gmra.mrb[0].mxu0 %v313
    %v358 = vpop.f32.mrb[0].mxu0
    %v359 = vadd.f32 0.0, %v358
    %v360 = vpop.f32.mrb[0].mxu0
    %v361 = vpop.f32.mrb[0].mxu0
    %v362 = vadd.f32 0.0, %v361
    %v363 = vpop.f32.mrb[0].mxu0
    %364 = vmatprep.mubr.bf16.mxu0 0
    %365 = vmatmul.mubr.bf16.gmra.mrb[0].mxu0 %v316
    %v366 = vpop.f32.mrb[0].mxu0
    %v367 = vadd.f32 0.0, %v366
    %v368 = vpop.f32.mrb[0].mxu0
    %v369 = vpop.f32.mrb[0].mxu0
    %v370 = vadd.f32 0.0, %v369
    %v371 = vpop.f32.mrb[0].mxu0
    %372 = vmatprep.mubr.bf16.mxu0 0
    %373 = vmatmul.mubr.bf16.gmra.mrb[0].mxu0 %v319
    %v374 = vpop.f32.mrb[0].mxu0
    %v375 = vadd.f32 0.0, %v374
    %v376 = vpop.f32.mrb[0].mxu0
    %v377 = vpop.f32.mrb[0].mxu0
    %v378 = vpop.f32.mrb[0].mxu0
    %379 = vdwg.mxu0
    %vm380 = vcmp.ge.f32.partialorder %v359, 0.0
    %vm381 = vcmp.ge.f32.partialorder %v362, 0.0
    %vm382 = vcmp.ge.f32.partialorder %v367, 0.0
    %vm383 = vcmp.ge.f32.partialorder %v370, 0.0
    %vm384 = vcmp.ge.f32.partialorder %v375, 0.0
    %v385 = vmul.f32 %v359, 1.4142135
    %v386 = vmul.f32 %v362, 1.4142135
    %v387 = vmul.f32 %v367, 1.4142135
    %v388 = vmul.f32 %v370, 1.4142135
    %v389 = vmul.f32 %v375, 1.4142135
    %v390 = vmul.f32 %v359, 0.28284273
    %v391 = vmul.f32 %v362, 0.28284273
    %v392 = vmul.f32 %v367, 0.28284273
    %v393 = vmul.f32 %v370, 0.28284273
    %v394 = vmul.f32 %v375, 0.28284273
    %v395 = vsel %vm380, %v385, %v390
    %v396 = vsel %vm381, %v386, %v391
    %v397 = vsel %vm382, %v387, %v392
    %v398 = vsel %vm383, %v388, %v393
    %v399 = vsel %vm384, %v389, %v394
    %s400 = scalar_lea.vmem [#allocation5], 60
    %v401 = vld [vmem:[%s400] sm:$0xf]
    %v402 = vld [vmem:[%s400 + $0x4] sm:$0xf]
    %v403 = vld [vmem:[%s400 + $0x8] sm:$0xf]
    %v404 = vld [vmem:[%s400 + $0xc] sm:$0xf]
    %v405 = vld [vmem:[%s400 + $0x10] sm:$0xf]
    %v406 = vpack.c.bf16 %v396, %v395
    %v407 = vpack.c.bf16 %v398, %v397
    %v408 = vpack.c.bf16 %v399, %v399
    %v414 = vunpack.c.l.b16 %v401
    %v415 = vunpack.c.l.b16 %v402
    %v416 = vunpack.c.l.b16 %v403
    %v417 = vunpack.c.l.b16 %v404
    %v418 = vunpack.c.l.b16 %v405
    %v419 = vpack.c.b16 %v415, %v414
    %v420 = vpack.c.b16 %v417, %v416
    %v421 = vpack.c.b16 %v418, %v418
    %v423 = vsel %vm90, %v419, 0
    %v426 = vsel %vm90, %v420, 0
    %v429 = vsel %vm90, %v421, 0
    %v432 = vsel %vm100, %v408, 0
    %434 = vmatprep.subr.bf16.mxu0 0
    %435 = vmatpush1.bf16.msra.mxu0 %v406
    %436 = vmatprep.subr.bf16.mxu0 0
    %437 = vmatpush1.bf16.msra.mxu0 %v407
    %438 = vmatprep.subr.bf16.mxu0 0
    %439 = vmatpush1.bf16.msra.mxu0 %v432
    %440 = vmatprep.subr.bf16.mxu0 0
    %441 = vmatpush1.bf16.msra.mxu0 0
    %442 = vmatprep.subr.bf16.mxu0 0
    %443 = vmatpush1.bf16.msra.mxu0 0
    %444 = vmatprep.subr.bf16.mxu0 0
    %445 = vmatpush1.bf16.msra.mxu0 0
    %446 = vmatprep.subr.bf16.mxu0 0
    %447 = vmatpush1.bf16.msra.mxu0 0
    %448 = vmatprep.subr.bf16.mxu0 0
    %449 = vmatpush1.bf16.msra.mxu0 0
    %450 = vmatprep.subr.bf16.mxu0 0
    %451 = vmatpush1.bf16.msra.mxu0 0
    %452 = vmatprep.subr.bf16.mxu0 0
    %453 = vmatpush1.bf16.msra.mxu0 0
    %454 = vmatprep.subr.bf16.mxu0 0
    %455 = vmatpush1.bf16.msra.mxu0 0
    %456 = vmatprep.subr.bf16.mxu0 0
    %457 = vmatpush1.bf16.msra.mxu0 0
    %458 = vmatprep.subr.bf16.mxu0 0
    %459 = vmatpush1.bf16.msra.mxu0 0
    %460 = vmatprep.subr.bf16.mxu0 0
    %461 = vmatpush1.bf16.msra.mxu0 0
    %462 = vmatprep.subr.bf16.mxu0 0
    %463 = vmatpush1.bf16.msra.mxu0 0
    %464 = vmatprep.subr.bf16.mxu0 0
    %465 = vmatpush1.bf16.msra.mxu0 0
    %466 = vmatprep.mubr.bf16.mxu0 0
    %467 = vmatmul.mubr.bf16.gmra.mrb[0].mxu0 %v423
    %v468 = vpop.f32.mrb[0].mxu0
    %v469 = vadd.f32 0.0, %v468
    %v470 = vpop.f32.mrb[0].mxu0
    %v471 = vpop.f32.mrb[0].mxu0
    %v472 = vadd.f32 0.0, %v471
    %v473 = vpop.f32.mrb[0].mxu0
    %474 = vmatprep.mubr.bf16.mxu0 0
    %475 = vmatmul.mubr.bf16.gmra.mrb[0].mxu0 %v426
    %v476 = vpop.f32.mrb[0].mxu0
    %v477 = vadd.f32 0.0, %v476
    %v478 = vpop.f32.mrb[0].mxu0
    %v479 = vpop.f32.mrb[0].mxu0
    %v480 = vadd.f32 0.0, %v479
    %v481 = vpop.f32.mrb[0].mxu0
    %482 = vmatprep.mubr.bf16.mxu0 0
    %483 = vmatmul.mubr.bf16.gmra.mrb[0].mxu0 %v429
    %v484 = vpop.f32.mrb[0].mxu0
    %v485 = vadd.f32 0.0, %v484
    %v486 = vpop.f32.mrb[0].mxu0
    %v487 = vpop.f32.mrb[0].mxu0
    %v488 = vpop.f32.mrb[0].mxu0
    %489 = vdwg.mxu0
    %vm490 = vcmp.ge.f32.partialorder %v469, 0.0
    %vm491 = vcmp.ge.f32.partialorder %v472, 0.0
    %vm492 = vcmp.ge.f32.partialorder %v477, 0.0
    %vm493 = vcmp.ge.f32.partialorder %v480, 0.0
    %vm494 = vcmp.ge.f32.partialorder %v485, 0.0
    %v495 = vmul.f32 %v469, 1.4142135
    %v496 = vmul.f32 %v472, 1.4142135
    %v497 = vmul.f32 %v477, 1.4142135
    %v498 = vmul.f32 %v480, 1.4142135
    %v499 = vmul.f32 %v485, 1.4142135
    %v500 = vmul.f32 %v469, 0.28284273
    %v501 = vmul.f32 %v472, 0.28284273
    %v502 = vmul.f32 %v477, 0.28284273
    %v503 = vmul.f32 %v480, 0.28284273
    %v504 = vmul.f32 %v485, 0.28284273
    %v505 = vsel %vm490, %v495, %v500
    %v506 = vsel %vm491, %v496, %v501
    %v507 = vsel %vm492, %v497, %v502
    %v508 = vsel %vm493, %v498, %v503
    %v509 = vsel %vm494, %v499, %v504
    %s510 = scalar_lea.vmem [#allocation5], 80
    %v511 = vld [vmem:[%s510] sm:$0xf]
    %v512 = vld [vmem:[%s510 + $0x4] sm:$0xf]
    %v513 = vld [vmem:[%s510 + $0x8] sm:$0xf]
    %v514 = vld [vmem:[%s510 + $0xc] sm:$0xf]
    %v515 = vld [vmem:[%s510 + $0x10] sm:$0xf]
    %v516 = vpack.c.bf16 %v506, %v505
    %v517 = vpack.c.bf16 %v508, %v507
    %v518 = vpack.c.bf16 %v509, %v509
    %v524 = vunpack.c.l.b16 %v511
    %v525 = vunpack.c.l.b16 %v512
    %v526 = vunpack.c.l.b16 %v513
    %v527 = vunpack.c.l.b16 %v514
    %v528 = vunpack.c.l.b16 %v515
    %v529 = vpack.c.b16 %v525, %v524
    %v530 = vpack.c.b16 %v527, %v526
    %v531 = vpack.c.b16 %v528, %v528
    %v533 = vsel %vm90, %v529, 0
    %v536 = vsel %vm90, %v530, 0
    %v539 = vsel %vm90, %v531, 0
    %v542 = vsel %vm100, %v518, 0
    %544 = vmatprep.subr.bf16.mxu0 0
    %545 = vmatpush1.bf16.msra.mxu0 %v516
    %546 = vmatprep.subr.bf16.mxu0 0
    %547 = vmatpush1.bf16.msra.mxu0 %v517
    %548 = vmatprep.subr.bf16.mxu0 0
    %549 = vmatpush1.bf16.msra.mxu0 %v542
    %550 = vmatprep.subr.bf16.mxu0 0
    %551 = vmatpush1.bf16.msra.mxu0 0
    %552 = vmatprep.subr.bf16.mxu0 0
    %553 = vmatpush1.bf16.msra.mxu0 0
    %554 = vmatprep.subr.bf16.mxu0 0
    %555 = vmatpush1.bf16.msra.mxu0 0
    %556 = vmatprep.subr.bf16.mxu0 0
    %557 = vmatpush1.bf16.msra.mxu0 0
    %558 = vmatprep.subr.bf16.mxu0 0
    %559 = vmatpush1.bf16.msra.mxu0 0
    %560 = vmatprep.subr.bf16.mxu0 0
    %561 = vmatpush1.bf16.msra.mxu0 0
    %562 = vmatprep.subr.bf16.mxu0 0
    %563 = vmatpush1.bf16.msra.mxu0 0
    %564 = vmatprep.subr.bf16.mxu0 0
    %565 = vmatpush1.bf16.msra.mxu0 0
    %566 = vmatprep.subr.bf16.mxu0 0
    %567 = vmatpush1.bf16.msra.mxu0 0
    %568 = vmatprep.subr.bf16.mxu0 0
    %569 = vmatpush1.bf16.msra.mxu0 0
    %570 = vmatprep.subr.bf16.mxu0 0
    %571 = vmatpush1.bf16.msra.mxu0 0
    %572 = vmatprep.subr.bf16.mxu0 0
    %573 = vmatpush1.bf16.msra.mxu0 0
    %574 = vmatprep.subr.bf16.mxu0 0
    %575 = vmatpush1.bf16.msra.mxu0 0
    %576 = vmatprep.mubr.bf16.mxu0 0
    %577 = vmatmul.mubr.bf16.gmra.mrb[0].mxu0 %v533
    %v578 = vpop.f32.mrb[0].mxu0
    %v579 = vadd.f32 0.0, %v578
    %v580 = vpop.f32.mrb[0].mxu0
    %v581 = vpop.f32.mrb[0].mxu0
    %v582 = vadd.f32 0.0, %v581
    %v583 = vpop.f32.mrb[0].mxu0
    %584 = vmatprep.mubr.bf16.mxu0 0
    %585 = vmatmul.mubr.bf16.gmra.mrb[0].mxu0 %v536
    %v586 = vpop.f32.mrb[0].mxu0
    %v587 = vadd.f32 0.0, %v586
    %v588 = vpop.f32.mrb[0].mxu0
    %v589 = vpop.f32.mrb[0].mxu0
    %v590 = vadd.f32 0.0, %v589
    %v591 = vpop.f32.mrb[0].mxu0
    %592 = vmatprep.mubr.bf16.mxu0 0
    %593 = vmatmul.mubr.bf16.gmra.mrb[0].mxu0 %v539
    %v594 = vpop.f32.mrb[0].mxu0
    %v595 = vadd.f32 0.0, %v594
    %v596 = vpop.f32.mrb[0].mxu0
    %v597 = vpop.f32.mrb[0].mxu0
    %v598 = vpop.f32.mrb[0].mxu0
    %599 = vdwg.mxu0
    %vm600 = vcmp.ge.f32.partialorder %v579, 0.0
    %vm601 = vcmp.ge.f32.partialorder %v582, 0.0
    %vm602 = vcmp.ge.f32.partialorder %v587, 0.0
    %vm603 = vcmp.ge.f32.partialorder %v590, 0.0
    %vm604 = vcmp.ge.f32.partialorder %v595, 0.0
    %v605 = vmul.f32 %v579, 1.4142135
    %v606 = vmul.f32 %v582, 1.4142135
    %v607 = vmul.f32 %v587, 1.4142135
    %v608 = vmul.f32 %v590, 1.4142135
    %v609 = vmul.f32 %v595, 1.4142135
    %v610 = vmul.f32 %v579, 0.28284273
    %v611 = vmul.f32 %v582, 0.28284273
    %v612 = vmul.f32 %v587, 0.28284273
    %v613 = vmul.f32 %v590, 0.28284273
    %v614 = vmul.f32 %v595, 0.28284273
    %v615 = vsel %vm600, %v605, %v610
    %v616 = vsel %vm601, %v606, %v611
    %v617 = vsel %vm602, %v607, %v612
    %v618 = vsel %vm603, %v608, %v613
    %v619 = vsel %vm604, %v609, %v614
    %s620 = scalar_lea.vmem [#allocation5], 100
    %v621 = vld [vmem:[%s620] sm:$0xf]
    %v622 = vld [vmem:[%s620 + $0x4] sm:$0xf]
    %v623 = vld [vmem:[%s620 + $0x8] sm:$0xf]
    %v624 = vld [vmem:[%s620 + $0xc] sm:$0xf]
    %v625 = vld [vmem:[%s620 + $0x10] sm:$0xf]
    %v626 = vpack.c.bf16 %v616, %v615
    %v627 = vpack.c.bf16 %v618, %v617
    %v628 = vpack.c.bf16 %v619, %v619
    %v634 = vunpack.c.l.b16 %v621
    %v635 = vunpack.c.l.b16 %v622
    %v636 = vunpack.c.l.b16 %v623
    %v637 = vunpack.c.l.b16 %v624
    %v638 = vunpack.c.l.b16 %v625
    %v639 = vpack.c.b16 %v635, %v634
    %v640 = vpack.c.b16 %v637, %v636
    %v641 = vpack.c.b16 %v638, %v638
    %v643 = vsel %vm90, %v639, 0
    %v646 = vsel %vm90, %v640, 0
    %v649 = vsel %vm90, %v641, 0
    %v652 = vsel %vm100, %v628, 0
    %654 = vmatprep.subr.bf16.mxu0 0
    %655 = vmatpush1.bf16.msra.mxu0 %v626
    %656 = vmatprep.subr.bf16.mxu0 0
    %657 = vmatpush1.bf16.msra.mxu0 %v627
    %658 = vmatprep.subr.bf16.mxu0 0
    %659 = vmatpush1.bf16.msra.mxu0 %v652
    %660 = vmatprep.subr.bf16.mxu0 0
    %661 = vmatpush1.bf16.msra.mxu0 0
    %662 = vmatprep.subr.bf16.mxu0 0
    %663 = vmatpush1.bf16.msra.mxu0 0
    %664 = vmatprep.subr.bf16.mxu0 0
    %665 = vmatpush1.bf16.msra.mxu0 0
    %666 = vmatprep.subr.bf16.mxu0 0
    %667 = vmatpush1.bf16.msra.mxu0 0
    %668 = vmatprep.subr.bf16.mxu0 0
    %669 = vmatpush1.bf16.msra.mxu0 0
    %670 = vmatprep.subr.bf16.mxu0 0
    %671 = vmatpush1.bf16.msra.mxu0 0
    %672 = vmatprep.subr.bf16.mxu0 0
    %673 = vmatpush1.bf16.msra.mxu0 0
    %674 = vmatprep.subr.bf16.mxu0 0
    %675 = vmatpush1.bf16.msra.mxu0 0
    %676 = vmatprep.subr.bf16.mxu0 0
    %677 = vmatpush1.bf16.msra.mxu0 0
    %678 = vmatprep.subr.bf16.mxu0 0
    %679 = vmatpush1.bf16.msra.mxu0 0
    %680 = vmatprep.subr.bf16.mxu0 0
    %681 = vmatpush1.bf16.msra.mxu0 0
    %682 = vmatprep.subr.bf16.mxu0 0
    %683 = vmatpush1.bf16.msra.mxu0 0
    %684 = vmatprep.subr.bf16.mxu0 0
    %685 = vmatpush1.bf16.msra.mxu0 0
    %686 = vmatprep.mubr.bf16.mxu0 0
    %687 = vmatmul.mubr.bf16.gmra.mrb[0].mxu0 %v643
    %v688 = vpop.f32.mrb[0].mxu0
    %v689 = vadd.f32 0.0, %v688
    %v690 = vpop.f32.mrb[0].mxu0
    %v691 = vpop.f32.mrb[0].mxu0
    %v692 = vadd.f32 0.0, %v691
    %v693 = vpop.f32.mrb[0].mxu0
    %694 = vmatprep.mubr.bf16.mxu0 0
    %695 = vmatmul.mubr.bf16.gmra.mrb[0].mxu0 %v646
    %v696 = vpop.f32.mrb[0].mxu0
    %v697 = vadd.f32 0.0, %v696
    %v698 = vpop.f32.mrb[0].mxu0
    %v699 = vpop.f32.mrb[0].mxu0
    %v700 = vadd.f32 0.0, %v699
    %v701 = vpop.f32.mrb[0].mxu0
    %702 = vmatprep.mubr.bf16.mxu0 0
    %703 = vmatmul.mubr.bf16.gmra.mrb[0].mxu0 %v649
    %v704 = vpop.f32.mrb[0].mxu0
    %v705 = vadd.f32 0.0, %v704
    %v706 = vpop.f32.mrb[0].mxu0
    %v707 = vpop.f32.mrb[0].mxu0
    %v708 = vpop.f32.mrb[0].mxu0
    %709 = vdwg.mxu0
    %vm710 = vcmp.ge.f32.partialorder %v689, 0.0
    %vm711 = vcmp.ge.f32.partialorder %v692, 0.0
    %vm712 = vcmp.ge.f32.partialorder %v697, 0.0
    %vm713 = vcmp.ge.f32.partialorder %v700, 0.0
    %vm714 = vcmp.ge.f32.partialorder %v705, 0.0
    %v715 = vmul.f32 %v689, 1.4142135
    %v716 = vmul.f32 %v692, 1.4142135
    %v717 = vmul.f32 %v697, 1.4142135
    %v718 = vmul.f32 %v700, 1.4142135
    %v719 = vmul.f32 %v705, 1.4142135
    %v720 = vmul.f32 %v689, 0.28284273
    %v721 = vmul.f32 %v692, 0.28284273
    %v722 = vmul.f32 %v697, 0.28284273
    %v723 = vmul.f32 %v700, 0.28284273
    %v724 = vmul.f32 %v705, 0.28284273
    %v725 = vsel %vm710, %v715, %v720
    %v726 = vsel %vm711, %v716, %v721
    %v727 = vsel %vm712, %v717, %v722
    %v728 = vsel %vm713, %v718, %v723
    %v729 = vsel %vm714, %v719, %v724
    %s730 = scalar_lea.vmem [#allocation5], 120
    %v731 = vld [vmem:[%s730] sm:$0xf]
    %v732 = vld [vmem:[%s730 + $0x4] sm:$0xf]
    %v733 = vld [vmem:[%s730 + $0x8] sm:$0xf]
    %v734 = vld [vmem:[%s730 + $0xc] sm:$0xf]
    %v735 = vld [vmem:[%s730 + $0x10] sm:$0xf]
    %v736 = vpack.c.bf16 %v726, %v725
    %v737 = vpack.c.bf16 %v728, %v727
    %v738 = vpack.c.bf16 %v729, %v729
    %v744 = vunpack.c.l.b16 %v731
    %v745 = vunpack.c.l.b16 %v732
    %v746 = vunpack.c.l.b16 %v733
    %v747 = vunpack.c.l.b16 %v734
    %v748 = vunpack.c.l.b16 %v735
    %v749 = vpack.c.b16 %v745, %v744
    %v750 = vpack.c.b16 %v747, %v746
    %v751 = vpack.c.b16 %v748, %v748
    %v753 = vsel %vm90, %v749, 0
    %v756 = vsel %vm90, %v750, 0
    %v759 = vsel %vm90, %v751, 0
    %v762 = vsel %vm100, %v738, 0
    %764 = vmatprep.subr.bf16.mxu0 0
    %765 = vmatpush1.bf16.msra.mxu0 %v736
    %766 = vmatprep.subr.bf16.mxu0 0
    %767 = vmatpush1.bf16.msra.mxu0 %v737
    %768 = vmatprep.subr.bf16.mxu0 0
    %769 = vmatpush1.bf16.msra.mxu0 %v762
    %770 = vmatprep.subr.bf16.mxu0 0
    %771 = vmatpush1.bf16.msra.mxu0 0
    %772 = vmatprep.subr.bf16.mxu0 0
    %773 = vmatpush1.bf16.msra.mxu0 0
    %774 = vmatprep.subr.bf16.mxu0 0
    %775 = vmatpush1.bf16.msra.mxu0 0
    %776 = vmatprep.subr.bf16.mxu0 0
    %777 = vmatpush1.bf16.msra.mxu0 0
    %778 = vmatprep.subr.bf16.mxu0 0
    %779 = vmatpush1.bf16.msra.mxu0 0
    %780 = vmatprep.subr.bf16.mxu0 0
    %781 = vmatpush1.bf16.msra.mxu0 0
    %782 = vmatprep.subr.bf16.mxu0 0
    %783 = vmatpush1.bf16.msra.mxu0 0
    %784 = vmatprep.subr.bf16.mxu0 0
    %785 = vmatpush1.bf16.msra.mxu0 0
    %786 = vmatprep.subr.bf16.mxu0 0
    %787 = vmatpush1.bf16.msra.mxu0 0
    %788 = vmatprep.subr.bf16.mxu0 0
    %789 = vmatpush1.bf16.msra.mxu0 0
    %790 = vmatprep.subr.bf16.mxu0 0
    %791 = vmatpush1.bf16.msra.mxu0 0
    %792 = vmatprep.subr.bf16.mxu0 0
    %793 = vmatpush1.bf16.msra.mxu0 0
    %794 = vmatprep.subr.bf16.mxu0 0
    %795 = vmatpush1.bf16.msra.mxu0 0
    %796 = vmatprep.mubr.bf16.mxu0 0
    %797 = vmatmul.mubr.bf16.gmra.mrb[0].mxu0 %v753
    %v798 = vpop.f32.mrb[0].mxu0
    %v799 = vadd.f32 0.0, %v798
    %v800 = vpop.f32.mrb[0].mxu0
    %v801 = vpop.f32.mrb[0].mxu0
    %v802 = vadd.f32 0.0, %v801
    %v803 = vpop.f32.mrb[0].mxu0
    %804 = vmatprep.mubr.bf16.mxu0 0
    %805 = vmatmul.mubr.bf16.gmra.mrb[0].mxu0 %v756
    %v806 = vpop.f32.mrb[0].mxu0
    %v807 = vadd.f32 0.0, %v806
    %v808 = vpop.f32.mrb[0].mxu0
    %v809 = vpop.f32.mrb[0].mxu0
    %v810 = vadd.f32 0.0, %v809
    %v811 = vpop.f32.mrb[0].mxu0
    %812 = vmatprep.mubr.bf16.mxu0 0
    %813 = vmatmul.mubr.bf16.gmra.mrb[0].mxu0 %v759
    %v814 = vpop.f32.mrb[0].mxu0
    %v815 = vadd.f32 0.0, %v814
    %v816 = vpop.f32.mrb[0].mxu0
    %v817 = vpop.f32.mrb[0].mxu0
    %v818 = vpop.f32.mrb[0].mxu0
    %819 = vdwg.mxu0
    %vm820 = vcmp.ge.f32.partialorder %v799, 0.0
    %vm821 = vcmp.ge.f32.partialorder %v802, 0.0
    %vm822 = vcmp.ge.f32.partialorder %v807, 0.0
    %vm823 = vcmp.ge.f32.partialorder %v810, 0.0
    %vm824 = vcmp.ge.f32.partialorder %v815, 0.0
    %v825 = vmul.f32 %v799, 1.4142135
    %v826 = vmul.f32 %v802, 1.4142135
    %v827 = vmul.f32 %v807, 1.4142135
    %v828 = vmul.f32 %v810, 1.4142135
    %v829 = vmul.f32 %v815, 1.4142135
    %v830 = vmul.f32 %v799, 0.28284273
    %v831 = vmul.f32 %v802, 0.28284273
    %v832 = vmul.f32 %v807, 0.28284273
    %v833 = vmul.f32 %v810, 0.28284273
    %v834 = vmul.f32 %v815, 0.28284273
    %v835 = vsel %vm820, %v825, %v830
    %v836 = vsel %vm821, %v826, %v831
    %v837 = vsel %vm822, %v827, %v832
    %v838 = vsel %vm823, %v828, %v833
    %v839 = vsel %vm824, %v829, %v834
    %s840 = scalar_lea.vmem [#allocation5], 140
    %v841 = vld [vmem:[%s840] sm:$0xf]
    %v842 = vld [vmem:[%s840 + $0x4] sm:$0xf]
    %v843 = vld [vmem:[%s840 + $0x8] sm:$0xf]
    %v844 = vld [vmem:[%s840 + $0xc] sm:$0xf]
    %v845 = vld [vmem:[%s840 + $0x10] sm:$0xf]
    %v846 = vpack.c.bf16 %v836, %v835
    %v847 = vpack.c.bf16 %v838, %v837
    %v848 = vpack.c.bf16 %v839, %v839
    %v854 = vunpack.c.l.b16 %v841
    %v855 = vunpack.c.l.b16 %v842
    %v856 = vunpack.c.l.b16 %v843
    %v857 = vunpack.c.l.b16 %v844
    %v858 = vunpack.c.l.b16 %v845
    %v859 = vpack.c.b16 %v855, %v854
    %v860 = vpack.c.b16 %v857, %v856
    %v861 = vpack.c.b16 %v858, %v858
    %v863 = vsel %vm90, %v859, 0
    %v866 = vsel %vm90, %v860, 0
    %v869 = vsel %vm90, %v861, 0
    %v872 = vsel %vm100, %v848, 0
    %874 = vmatprep.subr.bf16.mxu0 0
    %875 = vmatpush1.bf16.msra.mxu0 %v846
    %876 = vmatprep.subr.bf16.mxu0 0
    %877 = vmatpush1.bf16.msra.mxu0 %v847
    %878 = vmatprep.subr.bf16.mxu0 0
    %879 = vmatpush1.bf16.msra.mxu0 %v872
    %880 = vmatprep.subr.bf16.mxu0 0
    %881 = vmatpush1.bf16.msra.mxu0 0
    %882 = vmatprep.subr.bf16.mxu0 0
    %883 = vmatpush1.bf16.msra.mxu0 0
    %884 = vmatprep.subr.bf16.mxu0 0
    %885 = vmatpush1.bf16.msra.mxu0 0
    %886 = vmatprep.subr.bf16.mxu0 0
    %887 = vmatpush1.bf16.msra.mxu0 0
    %888 = vmatprep.subr.bf16.mxu0 0
    %889 = vmatpush1.bf16.msra.mxu0 0
    %890 = vmatprep.subr.bf16.mxu0 0
    %891 = vmatpush1.bf16.msra.mxu0 0
    %892 = vmatprep.subr.bf16.mxu0 0
    %893 = vmatpush1.bf16.msra.mxu0 0
    %894 = vmatprep.subr.bf16.mxu0 0
    %895 = vmatpush1.bf16.msra.mxu0 0
    %896 = vmatprep.subr.bf16.mxu0 0
    %897 = vmatpush1.bf16.msra.mxu0 0
    %898 = vmatprep.subr.bf16.mxu0 0
    %899 = vmatpush1.bf16.msra.mxu0 0
    %900 = vmatprep.subr.bf16.mxu0 0
    %901 = vmatpush1.bf16.msra.mxu0 0
    %902 = vmatprep.subr.bf16.mxu0 0
    %903 = vmatpush1.bf16.msra.mxu0 0
    %904 = vmatprep.subr.bf16.mxu0 0
    %905 = vmatpush1.bf16.msra.mxu0 0
    %906 = vmatprep.mubr.bf16.mxu0 0
    %907 = vmatmul.mubr.bf16.gmra.mrb[0].mxu0 %v863
    %v908 = vpop.f32.mrb[0].mxu0
    %v909 = vadd.f32 0.0, %v908
    %v910 = vpop.f32.mrb[0].mxu0
    %v911 = vpop.f32.mrb[0].mxu0
    %v912 = vadd.f32 0.0, %v911
    %v913 = vpop.f32.mrb[0].mxu0
    %914 = vmatprep.mubr.bf16.mxu0 0
    %915 = vmatmul.mubr.bf16.gmra.mrb[0].mxu0 %v866
    %v916 = vpop.f32.mrb[0].mxu0
    %v917 = vadd.f32 0.0, %v916
    %v918 = vpop.f32.mrb[0].mxu0
    %v919 = vpop.f32.mrb[0].mxu0
    %v920 = vadd.f32 0.0, %v919
    %v921 = vpop.f32.mrb[0].mxu0
    %922 = vmatprep.mubr.bf16.mxu0 0
    %923 = vmatmul.mubr.bf16.gmra.mrb[0].mxu0 %v869
    %v924 = vpop.f32.mrb[0].mxu0
    %v925 = vadd.f32 0.0, %v924
    %v926 = vpop.f32.mrb[0].mxu0
    %v927 = vpop.f32.mrb[0].mxu0
    %v928 = vpop.f32.mrb[0].mxu0
    %929 = vdwg.mxu0
    %vm930 = vcmp.ge.f32.partialorder %v909, 0.0
    %vm931 = vcmp.ge.f32.partialorder %v912, 0.0
    %vm932 = vcmp.ge.f32.partialorder %v917, 0.0
    %vm933 = vcmp.ge.f32.partialorder %v920, 0.0
    %vm934 = vcmp.ge.f32.partialorder %v925, 0.0
    %v935 = vmul.f32 %v909, 1.4142135
    %v936 = vmul.f32 %v912, 1.4142135
    %v937 = vmul.f32 %v917, 1.4142135
    %v938 = vmul.f32 %v920, 1.4142135
    %v939 = vmul.f32 %v925, 1.4142135
    %v940 = vmul.f32 %v909, 0.28284273
    %v941 = vmul.f32 %v912, 0.28284273
    %v942 = vmul.f32 %v917, 0.28284273
    %v943 = vmul.f32 %v920, 0.28284273
    %v944 = vmul.f32 %v925, 0.28284273
    %v945 = vsel %vm930, %v935, %v940
    %v946 = vsel %vm931, %v936, %v941
    %v947 = vsel %vm932, %v937, %v942
    %v948 = vsel %vm933, %v938, %v943
    %v949 = vsel %vm934, %v939, %v944
    %950 = vst [vmem:[#allocation7] sm:$0xff] %v945
    %951 = vst [vmem:[#allocation7 + $0x8] sm:$0xff] %v946
    %952 = vst [vmem:[#allocation7 + $0x10] sm:$0xff] %v947
    %953 = vst [vmem:[#allocation7 + $0x18] sm:$0xff] %v948
    %954 = vst [vmem:[#allocation7 + $0x20] sm:$0xff] %v949
    // Predicated region
    $region18: #{tpu_custom_call.1} parent=1 // pred_check
      _
    $region19: #{tpu_custom_call.1} parent=1 // pred_check_branch
      %956 = sbr.rel (0) target = $region21
    $region20: #{tpu_custom_call.1} parent=1 // pred_region
      %s958 = ssub.s32 640, 640
      %959 = vsyncadd [#allocation4], %s958
      %s960 = sshll.u32 [#allocation7], 4
      %s961 = int_to_ptr.vmem [resolvable:$true] %s960
      %966 = dma.vmem_to_hbm [thread:$0]  %s961, 640, %s2, [#allocation4], 128, 128, 8
    $region21: #{tpu_custom_call.1} parent=1 // pred_fallthru
      _
    // Predicated region
    $region22: #{tpu_custom_call.1} parent=1 // pred_check
      _
    $region23: #{tpu_custom_call.1} parent=1 // pred_check_branch
      %968 = sbr.rel (0) target = $region25
    $region24: #{tpu_custom_call.1} parent=1 // pred_region
      %969 = dma.done [#allocation4], 640
    $region25: #{tpu_custom_call.1} parent=1 // pred_fallthru
      _
    %970 = vsyncpa [#allocation3], 1
    %971 = vsyncpa [#allocation6], 1
    %972 = vsyncpa [#allocation4], 1

</llo_original>
